<compile_context>
chip_gen: v5e
topology: v5e:2x2
jax: 0.10.0
libtpu: 0.0.40
codegen_flags: <defaults>
</compile_context>

<pallas_src>
import jax
import jax.numpy as jnp
from jax import lax
from jax.experimental import pallas as pl
from jax.experimental.pallas import tpu as pltpu


def rnn_classifier_kernel(ids_ref, table_ref, whh_ref, wcls_ref, bcls_ref,
                          out_ref):
    # ids_ref:   (T*Bp, 1) int32, time-major token ids (padding_idx=0 rows for
    #            padded batch entries)
    # table_ref: (Vp, Hp) bf16, precomputed emb @ W_ih + b_ih + b_hh
    # whh_ref:   (Hp, Hp) bf16
    # wcls_ref:  (Hp, Cp) bf16, already scaled by 1/T (time mean folded in)
    # bcls_ref:  (1, Cp)  f32
    # out_ref:   (Bp, Cp) f32
    TB = ids_ref.shape[0]
    Bp = out_ref.shape[0]
    Hp = whh_ref.shape[0]
    Vp = table_ref.shape[0]
    T = TB // Bp

    # (1) Fused embedding gather + hoisted input projection + bias: a one-hot
    #     MXU matmul against the resident pre-projected table covers every
    #     time step at once.  Result lives in vregs (no VMEM scratch).
    ids = ids_ref[...]                                            # (TB, 1) i32
    one_hot = (lax.broadcasted_iota(jnp.int32, (TB, Vp), 1)
               == ids).astype(jnp.bfloat16)                       # (TB, Vp)
    xw = jnp.dot(one_hot, table_ref[...],
                 preferred_element_type=jnp.float32)              # (TB, Hp) f32

    # (2) Fully-unrolled recurrence (T small & static).  h/acc are each one
    #     (8,128) vreg; tanh rides the EUP slot, the acc add rides the VPU.
    # TODO(synk): hold W_hh weight-stationary in the MXU across the T serial
    # matmuls (pltpu.matmul_push_rhs once + matmul_acc_lhs/matmul_pop per
    # step) once bundle dumps confirm the RHS is re-staged every step.
    whh = whh_ref[...]                                            # hoisted load
    h = jnp.zeros((Bp, Hp), jnp.bfloat16)
    acc = jnp.zeros((Bp, Hp), jnp.float32)
    for t in range(T):
        xw_t = xw[t * Bp:(t + 1) * Bp, :]        # static sublane-aligned slice
        pre = xw_t + jnp.dot(h, whh, preferred_element_type=jnp.float32)
        h = jnp.tanh(pre.astype(jnp.bfloat16))   # bf16 carry: no extra convert
        acc = acc + h.astype(jnp.float32)        # f32 mean acc, off crit path

    # (3) Epilogue: classifier.  The 1/T mean scale is pre-folded into wcls.
    out_ref[...] = (jnp.dot(acc.astype(jnp.bfloat16), wcls_ref[...],
                            preferred_element_type=jnp.float32)
                    + bcls_ref[...])


def preprocess_params(params, sentence_length):
    """One-time weight preparation.  Call once and cache the result; none of
    this runs in the per-call hot path."""
    emb_table, w_ih, w_hh, b_ih, b_hh, w_cls, b_cls = params
    V, D = emb_table.shape
    H = w_hh.shape[0]
    C = w_cls.shape[1]
    T = sentence_length

    Vp = ((V + 127) // 128) * 128
    Hp = ((H + 127) // 128) * 128
    Cp = ((C + 127) // 128) * 128

    # Per-token pre-activation table: row v = emb[v] @ W_ih + b_ih + b_hh.
    # Gathering this table in-kernel IS the hoisted input projection + bias.
    # padding_idx=0 (emb[0] == 0) still contributes exactly the fused bias,
    # matching the reference recurrence for token 0.
    table = emb_table @ w_ih + (b_ih + b_hh)                       # (V, H) f32
    table_p = (jnp.zeros((Vp, Hp), jnp.float32)
               .at[:V, :H].set(table).astype(jnp.bfloat16))
    w_hh_p = (jnp.zeros((Hp, Hp), jnp.float32)
              .at[:H, :H].set(w_hh).astype(jnp.bfloat16))
    # Fold the 1/T mean-over-time into the classifier weight (one-time).
    w_cls_p = (jnp.zeros((Hp, Cp), jnp.float32)
               .at[:H, :C].set(w_cls / T).astype(jnp.bfloat16))
    b_cls_p = jnp.zeros((1, Cp), jnp.float32).at[:, :C].set(b_cls)

    return {"table": table_p, "w_hh": w_hh_p, "w_cls": w_cls_p,
            "b_cls": b_cls_p, "num_classes": C}


def torch_model_forward(tokens, prepared):
    """Equivalent of TorchModel.forward(x, y=None) -> logits (B, sentence_length+1)."""
    table_p = prepared["table"]
    w_hh_p = prepared["w_hh"]
    w_cls_p = prepared["w_cls"]
    b_cls_p = prepared["b_cls"]
    C = prepared["num_classes"]

    B, T = tokens.shape
    Bp = ((B + 7) // 8) * 8
    Cp = w_cls_p.shape[1]

    # Only per-call wrapper op: pad the batch with padding_idx=0 tokens and
    # flatten time-major.  ~T*Bp int32 values (hundreds of bytes) - the heavy
    # gather/pad/cast work is either one-time (weights) or in-kernel (gather).
    ids = (jnp.zeros((Bp, T), jnp.int32).at[:B, :].set(tokens)
           .T.reshape(T * Bp, 1))

    vmem = pl.BlockSpec(memory_space=pltpu.MemorySpace.VMEM)
    # TODO(synk): at production batch/sequence sizes add a batch grid axis with
    # dimension_semantics=("parallel", "arbitrary") (both v7x TensorCores),
    # stream T-blocks of the projection via BlockSpec index_maps with a bf16
    # VMEM scratch, and size batch tiles to the MXU width (128 rows v5e /
    # 256 rows v6e+); unnecessary at these toy shapes (~130 KiB total VMEM).
    logits_p = pl.pallas_call(
        rnn_classifier_kernel,
        out_shape=jax.ShapeDtypeStruct((Bp, Cp), jnp.float32),
        in_specs=[vmem] * 5,
        out_specs=vmem,
    )(ids, table_p, w_hh_p, w_cls_p, b_cls_p)
    # TODO(synk): CrossEntropyLoss branch (y is not None) not implemented; the
    # kernel reproduces the inference (logits) path only.
    return logits_p[:B, :C]


def make_params(key, vocab_size, vector_dim, hidden, num_classes):
    k = jax.random.split(key, 6)
    emb = jax.random.normal(k[0], (vocab_size, vector_dim), jnp.float32) * 0.1
    emb = emb.at[0].set(0.0)                                 # padding_idx=0
    w_ih = jax.random.normal(k[1], (vector_dim, hidden), jnp.float32) * 0.1
    w_hh = jax.random.normal(k[2], (hidden, hidden), jnp.float32) * 0.1
    b_ih = jax.random.normal(k[3], (1, hidden), jnp.float32) * 0.1
    b_hh = jax.random.normal(k[4], (1, hidden), jnp.float32) * 0.1
    w_cls = jax.random.normal(k[5], (hidden, num_classes), jnp.float32) * 0.1
    b_cls = jnp.zeros((1, num_classes), jnp.float32)
    return (emb, w_ih, w_hh, b_ih, b_hh, w_cls, b_cls)


def reference_forward(tokens, params):
    emb_table, w_ih, w_hh, b_ih, b_hh, w_cls, b_cls = params
    emb = emb_table[tokens]                                  # (B, T, D) f32

    def step(h, x_t):
        h_new = jnp.tanh(x_t @ w_ih + h @ w_hh + b_ih + b_hh)
        return h_new, h_new

    B = tokens.shape[0]
    h0 = jnp.zeros((B, w_hh.shape[0]), jnp.float32)
    _, hs = lax.scan(step, h0, jnp.transpose(emb, (1, 0, 2)))  # (T, B, H)
    mean_h = hs.mean(axis=0)
    return mean_h @ w_cls + b_cls


if __name__ == "__main__":
    vector_dim = 32
    sentence_length = 8
    vocab_size = 30
    hidden = 50
    num_classes = sentence_length + 1
    batch = 2

    key = jax.random.PRNGKey(0)
    kp, kt = jax.random.split(key)
    params = make_params(kp, vocab_size, vector_dim, hidden, num_classes)
    tokens = jax.random.randint(kt, (batch, sentence_length), 0, vocab_size,
                                dtype=jnp.int32)

    # One-time weight preprocessing (cached; NOT per-call work).
    prepared = preprocess_params(params, sentence_length)
    jax.block_until_ready([prepared["table"], prepared["w_hh"],
                           prepared["w_cls"], prepared["b_cls"]])

    logits = torch_model_forward(tokens, prepared)
    jax.block_until_ready(logits)

    ref = reference_forward(tokens, params)
    assert logits.shape == (batch, num_classes)
    # bf16 MXU operands / bf16 recurrent carry with f32 accumulation -> small
    # numeric delta vs the pure-f32 reference; tolerance sized accordingly.
    # (bf16 carry error compounds for much longer sequences / larger H; gate
    # it on sequence length if this kernel is reused at production shapes.)
    assert jnp.allclose(logits, ref, atol=2e-2, rtol=2e-2)
    print("KERNEL_OK")
</pallas_src>

<mosaic_0001>
module attributes {stable_mosaic.version = 11 : i64} {
  func.func @rnn_classifier_kernel(%arg0: memref<64x1xi32, #tpu.memory_space<vmem>>, %arg1: memref<128x128xbf16, #tpu.memory_space<vmem>>, %arg2: memref<128x128xbf16, #tpu.memory_space<vmem>>, %arg3: memref<128x128xbf16, #tpu.memory_space<vmem>>, %arg4: memref<1x128xf32, #tpu.memory_space<vmem>>, %arg5: memref<8x128xf32, #tpu.memory_space<vmem>>) attributes {dimension_semantics = [], scalar_prefetch = 0 : i64, scratch_operands = 0 : i64, tpu.core_type = #tpu.core_type<tc>} {
    %c0 = arith.constant 0 : index
    %c0_0 = arith.constant 0 : index
    %0 = vector.load %arg0[%c0, %c0_0] : memref<64x1xi32, #tpu.memory_space<vmem>>, vector<64x1xi32>
    %1 = tpu.iota {dimensions = array<i32: 1>} : vector<64x128xi32>
    %2 = vector.broadcast %0 : vector<64x1xi32> to vector<64x128xi32>
    %3 = arith.cmpi eq, %1, %2 : vector<64x128xi32>
    %4 = arith.extui %3 : vector<64x128xi1> to vector<64x128xi32>
    %5 = arith.sitofp %4 : vector<64x128xi32> to vector<64x128xf32>
    %6 = arith.truncf %5 : vector<64x128xf32> to vector<64x128xbf16>
    %c0_1 = arith.constant 0 : index
    %c0_2 = arith.constant 0 : index
    %7 = vector.load %arg1[%c0_1, %c0_2] : memref<128x128xbf16, #tpu.memory_space<vmem>>, vector<128x128xbf16>
    %cst = arith.constant dense<0.000000e+00> : vector<64x128xf32>
    %8 = tpu.matmul %6, %7, %cst {dimension_numbers = #tpu.dot_dimension_numbers<[1], [0], [0], [1], [0, 0, 1, 1], [], []>} : vector<64x128xbf16>, vector<128x128xbf16>, vector<64x128xf32> -> vector<64x128xf32>
    %c0_3 = arith.constant 0 : index
    %c0_4 = arith.constant 0 : index
    %9 = vector.load %arg2[%c0_3, %c0_4] : memref<128x128xbf16, #tpu.memory_space<vmem>>, vector<128x128xbf16>
    %cst_5 = arith.constant 0.000000e+00 : bf16
    %10 = vector.broadcast %cst_5 : bf16 to vector<8x128xbf16>
    %cst_6 = arith.constant 0.000000e+00 : f32
    %11 = vector.broadcast %cst_6 : f32 to vector<8x128xf32>
    %12 = vector.extract_strided_slice %8 {offsets = [0, 0], sizes = [8, 128], strides = [1, 1]} : vector<64x128xf32> to vector<8x128xf32>
    %cst_7 = arith.constant dense<0.000000e+00> : vector<8x128xf32>
    %13 = tpu.matmul %10, %9, %cst_7 {dimension_numbers = #tpu.dot_dimension_numbers<[1], [0], [0], [1], [0, 0, 1, 1], [], []>} : vector<8x128xbf16>, vector<128x128xbf16>, vector<8x128xf32> -> vector<8x128xf32>
    %14 = arith.addf %12, %13 : vector<8x128xf32>
    %15 = arith.truncf %14 : vector<8x128xf32> to vector<8x128xbf16>
    %16 = math.tanh %15 : vector<8x128xbf16>
    %17 = arith.extf %16 : vector<8x128xbf16> to vector<8x128xf32>
    %18 = arith.addf %11, %17 : vector<8x128xf32>
    %19 = vector.extract_strided_slice %8 {offsets = [8, 0], sizes = [8, 128], strides = [1, 1]} : vector<64x128xf32> to vector<8x128xf32>
    %cst_8 = arith.constant dense<0.000000e+00> : vector<8x128xf32>
    %20 = tpu.matmul %16, %9, %cst_8 {dimension_numbers = #tpu.dot_dimension_numbers<[1], [0], [0], [1], [0, 0, 1, 1], [], []>} : vector<8x128xbf16>, vector<128x128xbf16>, vector<8x128xf32> -> vector<8x128xf32>
    %21 = arith.addf %19, %20 : vector<8x128xf32>
    %22 = arith.truncf %21 : vector<8x128xf32> to vector<8x128xbf16>
    %23 = math.tanh %22 : vector<8x128xbf16>
    %24 = arith.extf %23 : vector<8x128xbf16> to vector<8x128xf32>
    %25 = arith.addf %18, %24 : vector<8x128xf32>
    %26 = vector.extract_strided_slice %8 {offsets = [16, 0], sizes = [8, 128], strides = [1, 1]} : vector<64x128xf32> to vector<8x128xf32>
    %cst_9 = arith.constant dense<0.000000e+00> : vector<8x128xf32>
    %27 = tpu.matmul %23, %9, %cst_9 {dimension_numbers = #tpu.dot_dimension_numbers<[1], [0], [0], [1], [0, 0, 1, 1], [], []>} : vector<8x128xbf16>, vector<128x128xbf16>, vector<8x128xf32> -> vector<8x128xf32>
    %28 = arith.addf %26, %27 : vector<8x128xf32>
    %29 = arith.truncf %28 : vector<8x128xf32> to vector<8x128xbf16>
    %30 = math.tanh %29 : vector<8x128xbf16>
    %31 = arith.extf %30 : vector<8x128xbf16> to vector<8x128xf32>
    %32 = arith.addf %25, %31 : vector<8x128xf32>
    %33 = vector.extract_strided_slice %8 {offsets = [24, 0], sizes = [8, 128], strides = [1, 1]} : vector<64x128xf32> to vector<8x128xf32>
    %cst_10 = arith.constant dense<0.000000e+00> : vector<8x128xf32>
    %34 = tpu.matmul %30, %9, %cst_10 {dimension_numbers = #tpu.dot_dimension_numbers<[1], [0], [0], [1], [0, 0, 1, 1], [], []>} : vector<8x128xbf16>, vector<128x128xbf16>, vector<8x128xf32> -> vector<8x128xf32>
    %35 = arith.addf %33, %34 : vector<8x128xf32>
    %36 = arith.truncf %35 : vector<8x128xf32> to vector<8x128xbf16>
    %37 = math.tanh %36 : vector<8x128xbf16>
    %38 = arith.extf %37 : vector<8x128xbf16> to vector<8x128xf32>
    %39 = arith.addf %32, %38 : vector<8x128xf32>
    %40 = vector.extract_strided_slice %8 {offsets = [32, 0], sizes = [8, 128], strides = [1, 1]} : vector<64x128xf32> to vector<8x128xf32>
    %cst_11 = arith.constant dense<0.000000e+00> : vector<8x128xf32>
    %41 = tpu.matmul %37, %9, %cst_11 {dimension_numbers = #tpu.dot_dimension_numbers<[1], [0], [0], [1], [0, 0, 1, 1], [], []>} : vector<8x128xbf16>, vector<128x128xbf16>, vector<8x128xf32> -> vector<8x128xf32>
    %42 = arith.addf %40, %41 : vector<8x128xf32>
    %43 = arith.truncf %42 : vector<8x128xf32> to vector<8x128xbf16>
    %44 = math.tanh %43 : vector<8x128xbf16>
    %45 = arith.extf %44 : vector<8x128xbf16> to vector<8x128xf32>
    %46 = arith.addf %39, %45 : vector<8x128xf32>
    %47 = vector.extract_strided_slice %8 {offsets = [40, 0], sizes = [8, 128], strides = [1, 1]} : vector<64x128xf32> to vector<8x128xf32>
    %cst_12 = arith.constant dense<0.000000e+00> : vector<8x128xf32>
    %48 = tpu.matmul %44, %9, %cst_12 {dimension_numbers = #tpu.dot_dimension_numbers<[1], [0], [0], [1], [0, 0, 1, 1], [], []>} : vector<8x128xbf16>, vector<128x128xbf16>, vector<8x128xf32> -> vector<8x128xf32>
    %49 = arith.addf %47, %48 : vector<8x128xf32>
    %50 = arith.truncf %49 : vector<8x128xf32> to vector<8x128xbf16>
    %51 = math.tanh %50 : vector<8x128xbf16>
    %52 = arith.extf %51 : vector<8x128xbf16> to vector<8x128xf32>
    %53 = arith.addf %46, %52 : vector<8x128xf32>
    %54 = vector.extract_strided_slice %8 {offsets = [48, 0], sizes = [8, 128], strides = [1, 1]} : vector<64x128xf32> to vector<8x128xf32>
    %cst_13 = arith.constant dense<0.000000e+00> : vector<8x128xf32>
    %55 = tpu.matmul %51, %9, %cst_13 {dimension_numbers = #tpu.dot_dimension_numbers<[1], [0], [0], [1], [0, 0, 1, 1], [], []>} : vector<8x128xbf16>, vector<128x128xbf16>, vector<8x128xf32> -> vector<8x128xf32>
    %56 = arith.addf %54, %55 : vector<8x128xf32>
    %57 = arith.truncf %56 : vector<8x128xf32> to vector<8x128xbf16>
    %58 = math.tanh %57 : vector<8x128xbf16>
    %59 = arith.extf %58 : vector<8x128xbf16> to vector<8x128xf32>
    %60 = arith.addf %53, %59 : vector<8x128xf32>
    %61 = vector.extract_strided_slice %8 {offsets = [56, 0], sizes = [8, 128], strides = [1, 1]} : vector<64x128xf32> to vector<8x128xf32>
    %cst_14 = arith.constant dense<0.000000e+00> : vector<8x128xf32>
    %62 = tpu.matmul %58, %9, %cst_14 {dimension_numbers = #tpu.dot_dimension_numbers<[1], [0], [0], [1], [0, 0, 1, 1], [], []>} : vector<8x128xbf16>, vector<128x128xbf16>, vector<8x128xf32> -> vector<8x128xf32>
    %63 = arith.addf %61, %62 : vector<8x128xf32>
    %64 = arith.truncf %63 : vector<8x128xf32> to vector<8x128xbf16>
    %65 = math.tanh %64 : vector<8x128xbf16>
    %66 = arith.extf %65 : vector<8x128xbf16> to vector<8x128xf32>
    %67 = arith.addf %60, %66 : vector<8x128xf32>
    %68 = arith.truncf %67 : vector<8x128xf32> to vector<8x128xbf16>
    %c0_15 = arith.constant 0 : index
    %c0_16 = arith.constant 0 : index
    %69 = vector.load %arg3[%c0_15, %c0_16] : memref<128x128xbf16, #tpu.memory_space<vmem>>, vector<128x128xbf16>
    %cst_17 = arith.constant dense<0.000000e+00> : vector<8x128xf32>
    %70 = tpu.matmul %68, %69, %cst_17 {dimension_numbers = #tpu.dot_dimension_numbers<[1], [0], [0], [1], [0, 0, 1, 1], [], []>} : vector<8x128xbf16>, vector<128x128xbf16>, vector<8x128xf32> -> vector<8x128xf32>
    %c0_18 = arith.constant 0 : index
    %c0_19 = arith.constant 0 : index
    %71 = vector.load %arg4[%c0_18, %c0_19] : memref<1x128xf32, #tpu.memory_space<vmem>>, vector<1x128xf32>
    %72 = vector.broadcast %71 : vector<1x128xf32> to vector<8x128xf32>
    %73 = arith.addf %70, %72 : vector<8x128xf32>
    %c0_20 = arith.constant 0 : index
    %c0_21 = arith.constant 0 : index
    %74 = vector.load %arg5[%c0_20, %c0_21] : memref<8x128xf32, #tpu.memory_space<vmem>>, vector<8x128xf32>
    tpu.vector_store %arg5[%c0_20, %c0_21], %73 {strides = array<i32>} : memref<8x128xf32, #tpu.memory_space<vmem>>, vector<8x128xf32>,
    return
  }
}

</mosaic_0001>

<llo_original>
// kernel: tpu_custom_call.1
$region0: #{tpu_custom_call.1}
  #allocation0 [shape = 'u32[]', space=smem, size = 0x4, offset = 0x4, fixed_abs, tag = 'smem constant byte address 0x4 - core index']
  #allocation1 [shape = 'u32[72,128]{1,0:T(1,128)}', space=vmem, size = 0x9000, scoped, tag = 'internal scratch']
  %s0 = inlined_call_operand.vmem [shape: s32[64,1], index: 0, kind: input, shape index: {}]
  %s1 = inlined_call_operand.vmem [shape: bf16[128,128], index: 1, kind: input, shape index: {}]
  %s2 = inlined_call_operand.hbm [shape: bf16[128,128], index: 2, kind: input, shape index: {}]
  %s3 = inlined_call_operand.hbm [shape: bf16[128,128], index: 3, kind: input, shape index: {}]
  %s4 = inlined_call_operand.vmem [shape: f32[1,128], index: 4, kind: input, shape index: {}]
  %s5 = inlined_call_operand.hbm [shape: f32[8,128], index: 5, kind: output, shape index: {}]
  %s6 = sld [smem:[#allocation0]]
  $region38: #{tpu_custom_call.1} parent=0
    _
  %s8 = ssub.s32 1, %s6
  %s9 = scalar_select 0, %s8, %s6
  $region1: #{tpu_custom_call.1} parent=0
    #allocation2 [shape = 'u8[32768]{0}', space=vmem, size = 0x8000, scoped, tag = 'input window, operand 2, single buffered']
    #allocation3 [shape = 's32[1]{0}', space=sflag, size = 0x4, scoped, tag = 'scoped memory for tpu_custom_call.1']
    #allocation4 [shape = 's32[1]{0}', space=sflag, size = 0x4, scoped, tag = 'scoped memory for tpu_custom_call.1']
    #allocation5 [shape = 'u8[32768]{0}', space=vmem, size = 0x8000, scoped, tag = 'input window, operand 3, single buffered']
    #allocation6 [shape = 's32[1]{0}', space=sflag, size = 0x4, scoped, tag = 'scoped memory for tpu_custom_call.1']
    #allocation7 [shape = 'u8[4096]{0}', space=vmem, size = 0x1000, scoped, tag = 'output window, operand 0, single buffered']
    %10 = vsyncpa [#allocation3], 0
    %11 = vsyncpa [#allocation6], 0
    %12 = vsyncpa [#allocation4], 0
    // Predicated region
    $region2: #{tpu_custom_call.1} parent=1 // pred_check
      _
    $region3: #{tpu_custom_call.1} parent=1 // pred_check_branch
      %14 = sbr.rel (0) target = $region5
    $region4: #{tpu_custom_call.1} parent=1 // pred_region
      _
    $region5: #{tpu_custom_call.1} parent=1 // pred_fallthru
      _
    // Predicated region
    $region6: #{tpu_custom_call.1} parent=1 // pred_check
      _
    $region7: #{tpu_custom_call.1} parent=1 // pred_check_branch
      %16 = sbr.rel (0) target = $region9
    $region8: #{tpu_custom_call.1} parent=1 // pred_region
      _
    $region9: #{tpu_custom_call.1} parent=1 // pred_fallthru
      _
    // Predicated region
    $region10: #{tpu_custom_call.1} parent=1 // pred_check
      _
    $region11: #{tpu_custom_call.1} parent=1 // pred_check_branch
      %18 = sbr.rel (0) target = $region13
    $region12: #{tpu_custom_call.1} parent=1 // pred_region
      %20 = vsyncadd [#allocation3], 0
      %s21 = sshll.u32 %s2, 4
      %s22 = int_to_ptr.hbm [resolvable:$true] %s21
      %s23 = sshll.u32 [#allocation2], 4
      %s24 = int_to_ptr.vmem [resolvable:$true] %s23
      %29 = dma.hbm_to_vmem [thread:$0]  %s22, 1024, %s24, [#allocation3], 64, 64, 4
    $region13: #{tpu_custom_call.1} parent=1 // pred_fallthru
      _
    // Predicated region
    $region14: #{tpu_custom_call.1} parent=1 // pred_check
      _
    $region15: #{tpu_custom_call.1} parent=1 // pred_check_branch
      %31 = sbr.rel (0) target = $region17
    $region16: #{tpu_custom_call.1} parent=1 // pred_region
      %33 = vsyncadd [#allocation6], 0
      %s34 = sshll.u32 %s3, 4
      %s35 = int_to_ptr.hbm [resolvable:$true] %s34
      %s36 = sshll.u32 [#allocation5], 4
      %s37 = int_to_ptr.vmem [resolvable:$true] %s36
      %42 = dma.hbm_to_vmem [thread:$0]  %s35, 1024, %s37, [#allocation6], 64, 64, 4
    $region17: #{tpu_custom_call.1} parent=1 // pred_fallthru
      _
    // Predicated region
    $region18: #{tpu_custom_call.1} parent=1 // pred_check
      _
    $region19: #{tpu_custom_call.1} parent=1 // pred_check_branch
      %44 = sbr.rel (0) target = $region21
    $region20: #{tpu_custom_call.1} parent=1 // pred_region
      _
    $region21: #{tpu_custom_call.1} parent=1 // pred_fallthru
      _
    // Predicated region
    $region22: #{tpu_custom_call.1} parent=1 // pred_check
      _
    $region23: #{tpu_custom_call.1} parent=1 // pred_check_branch
      %46 = sbr.rel (0) target = $region25
    $region24: #{tpu_custom_call.1} parent=1 // pred_region
      %48 = dma.done [#allocation3], 1024
    $region25: #{tpu_custom_call.1} parent=1 // pred_fallthru
      _
    // Predicated region
    $region26: #{tpu_custom_call.1} parent=1 // pred_check
      _
    $region27: #{tpu_custom_call.1} parent=1 // pred_check_branch
      %50 = sbr.rel (0) target = $region29
    $region28: #{tpu_custom_call.1} parent=1 // pred_region
      %52 = dma.done [#allocation6], 1024
    $region29: #{tpu_custom_call.1} parent=1 // pred_fallthru
      _
    %v54 = vld [vmem:[%s0] sm:$0xff]
    %v55 = vld [vmem:[%s0 + $0x8] sm:$0xff]
    %v56 = vld [vmem:[%s0 + $0x10] sm:$0xff]
    %v57 = vld [vmem:[%s0 + $0x18] sm:$0xff]
    %v58 = vld [vmem:[%s0 + $0x20] sm:$0xff]
    %v59 = vld [vmem:[%s0 + $0x28] sm:$0xff]
    %v60 = vld [vmem:[%s0 + $0x30] sm:$0xff]
    %v61 = vld [vmem:[%s0 + $0x38] sm:$0xff]
    %v62 = vlaneseq
    %v63 = vand.u32 %v62, 127
    %64 = vset.pattern.permute.xlu0 0
    %65 = vperm.xlu0 %64, %v54
    %v66 = vpop.permute.xlu0 %65
    %67 = vset.pattern.permute.xlu0 0
    %68 = vperm.xlu0 %67, %v55
    %v69 = vpop.permute.xlu0 %68
    %70 = vset.pattern.permute.xlu0 0
    %71 = vperm.xlu0 %70, %v56
    %v72 = vpop.permute.xlu0 %71
    %73 = vset.pattern.permute.xlu0 0
    %74 = vperm.xlu0 %73, %v57
    %v75 = vpop.permute.xlu0 %74
    %76 = vset.pattern.permute.xlu0 0
    %77 = vperm.xlu0 %76, %v58
    %v78 = vpop.permute.xlu0 %77
    %79 = vset.pattern.permute.xlu0 0
    %80 = vperm.xlu0 %79, %v59
    %v81 = vpop.permute.xlu0 %80
    %82 = vset.pattern.permute.xlu0 0
    %83 = vperm.xlu0 %82, %v60
    %v84 = vpop.permute.xlu0 %83
    %85 = vset.pattern.permute.xlu0 0
    %86 = vperm.xlu0 %85, %v61
    %v87 = vpop.permute.xlu0 %86
    %vm88 = vcmp.eq.s32.totalorder %v63, %v66
    %vm89 = vcmp.eq.s32.totalorder %v63, %v69
    %vm90 = vcmp.eq.s32.totalorder %v63, %v72
    %vm91 = vcmp.eq.s32.totalorder %v63, %v75
    %vm92 = vcmp.eq.s32.totalorder %v63, %v78
    %vm93 = vcmp.eq.s32.totalorder %v63, %v81
    %vm94 = vcmp.eq.s32.totalorder %v63, %v84
    %vm95 = vcmp.eq.s32.totalorder %v63, %v87
    %v96 = vsel %vm88, 1, 0
    %v97 = vsel %vm89, 1, 0
    %v98 = vsel %vm90, 1, 0
    %v99 = vsel %vm91, 1, 0
    %v100 = vsel %vm92, 1, 0
    %v101 = vsel %vm93, 1, 0
    %v102 = vsel %vm94, 1, 0
    %v103 = vsel %vm95, 1, 0
    %v104 = vcvt.s32.f32 %v96
    %v105 = vcvt.s32.f32 %v97
    %v106 = vcvt.s32.f32 %v98
    %v107 = vcvt.s32.f32 %v99
    %v108 = vcvt.s32.f32 %v100
    %v109 = vcvt.s32.f32 %v101
    %v110 = vcvt.s32.f32 %v102
    %v111 = vcvt.s32.f32 %v103
    %v112 = vpack.c.bf16 %v105, %v104
    %v113 = vpack.c.bf16 %v107, %v106
    %v114 = vpack.c.bf16 %v109, %v108
    %v115 = vpack.c.bf16 %v111, %v110
    %v116 = vld [vmem:[%s1] sm:$0xf]
    %v117 = vld [vmem:[%s1 + $0x4] sm:$0xf]
    %v118 = vld [vmem:[%s1 + $0x8] sm:$0xf]
    %v119 = vld [vmem:[%s1 + $0xc] sm:$0xf]
    %v120 = vld [vmem:[%s1 + $0x10] sm:$0xf]
    %v121 = vld [vmem:[%s1 + $0x14] sm:$0xf]
    %v122 = vld [vmem:[%s1 + $0x18] sm:$0xf]
    %v123 = vld [vmem:[%s1 + $0x1c] sm:$0xf]
    %v124 = vld [vmem:[%s1 + $0x20] sm:$0xf]
    %v125 = vld [vmem:[%s1 + $0x24] sm:$0xf]
    %v126 = vld [vmem:[%s1 + $0x28] sm:$0xf]
    %v127 = vld [vmem:[%s1 + $0x2c] sm:$0xf]
    %v128 = vld [vmem:[%s1 + $0x30] sm:$0xf]
    %v129 = vld [vmem:[%s1 + $0x34] sm:$0xf]
    %v130 = vld [vmem:[%s1 + $0x38] sm:$0xf]
    %v131 = vld [vmem:[%s1 + $0x3c] sm:$0xf]
    %v148 = vunpack.c.l.b16 %v116
    %v149 = vunpack.c.l.b16 %v117
    %v150 = vunpack.c.l.b16 %v118
    %v151 = vunpack.c.l.b16 %v119
    %v152 = vunpack.c.l.b16 %v120
    %v153 = vunpack.c.l.b16 %v121
    %v154 = vunpack.c.l.b16 %v122
    %v155 = vunpack.c.l.b16 %v123
    %v156 = vunpack.c.l.b16 %v124
    %v157 = vunpack.c.l.b16 %v125
    %v158 = vunpack.c.l.b16 %v126
    %v159 = vunpack.c.l.b16 %v127
    %v160 = vunpack.c.l.b16 %v128
    %v161 = vunpack.c.l.b16 %v129
    %v162 = vunpack.c.l.b16 %v130
    %v163 = vunpack.c.l.b16 %v131
    %v164 = vpack.c.b16 %v149, %v148
    %v165 = vpack.c.b16 %v151, %v150
    %v166 = vpack.c.b16 %v153, %v152
    %v167 = vpack.c.b16 %v155, %v154
    %v168 = vpack.c.b16 %v157, %v156
    %v169 = vpack.c.b16 %v159, %v158
    %v170 = vpack.c.b16 %v161, %v160
    %v171 = vpack.c.b16 %v163, %v162
    %180 = vmatpush.bf16.msra.mxu0 %v171
    %181 = vmatpush.bf16.msra.mxu0 %v170
    %182 = vmatpush.bf16.msra.mxu0 %v169
    %183 = vmatpush.bf16.msra.mxu0 %v168
    %184 = vmatpush.bf16.msra.mxu0 %v167
    %185 = vmatpush.bf16.msra.mxu0 %v166
    %186 = vmatpush.bf16.msra.mxu0 %v165
    %187 = vmatpush.bf16.msra.mxu0 %v164
    %188 = vmatmul.bf16.gmra.mxu0 %v112
    %v189 = vpop.f32.mrf.mxu0
    %v190 = vadd.f32 0.0, %v189
    %v191 = vpop.f32.mrf.mxu0
    %v192 = vadd.f32 0.0, %v191
    %193 = vmatmul.bf16.gmra.mxu0 %v113
    %v194 = vpop.f32.mrf.mxu0
    %v195 = vadd.f32 0.0, %v194
    %v196 = vpop.f32.mrf.mxu0
    %v197 = vadd.f32 0.0, %v196
    %198 = vmatmul.bf16.gmra.mxu0 %v114
    %v199 = vpop.f32.mrf.mxu0
    %v200 = vadd.f32 0.0, %v199
    %v201 = vpop.f32.mrf.mxu0
    %v202 = vadd.f32 0.0, %v201
    %203 = vmatmul.bf16.gmra.mxu0 %v115
    %v204 = vpop.f32.mrf.mxu0
    %v205 = vadd.f32 0.0, %v204
    %v206 = vpop.f32.mrf.mxu0
    %v207 = vadd.f32 0.0, %v206
    %208 = vdwg.mxu0
    %v209 = vld [vmem:[#allocation2] sm:$0xf]
    %v210 = vld [vmem:[#allocation2 + $0x4] sm:$0xf]
    %v211 = vld [vmem:[#allocation2 + $0x8] sm:$0xf]
    %v212 = vld [vmem:[#allocation2 + $0xc] sm:$0xf]
    %v213 = vld [vmem:[#allocation2 + $0x10] sm:$0xf]
    %v214 = vld [vmem:[#allocation2 + $0x14] sm:$0xf]
    %v215 = vld [vmem:[#allocation2 + $0x18] sm:$0xf]
    %v216 = vld [vmem:[#allocation2 + $0x1c] sm:$0xf]
    %v217 = vld [vmem:[#allocation2 + $0x20] sm:$0xf]
    %v218 = vld [vmem:[#allocation2 + $0x24] sm:$0xf]
    %v219 = vld [vmem:[#allocation2 + $0x28] sm:$0xf]
    %v220 = vld [vmem:[#allocation2 + $0x2c] sm:$0xf]
    %v221 = vld [vmem:[#allocation2 + $0x30] sm:$0xf]
    %v222 = vld [vmem:[#allocation2 + $0x34] sm:$0xf]
    %v223 = vld [vmem:[#allocation2 + $0x38] sm:$0xf]
    %v224 = vld [vmem:[#allocation2 + $0x3c] sm:$0xf]
    %v241 = vunpack.c.l.b16 %v209
    %v242 = vunpack.c.l.b16 %v210
    %v243 = vunpack.c.l.b16 %v211
    %v244 = vunpack.c.l.b16 %v212
    %v245 = vunpack.c.l.b16 %v213
    %v246 = vunpack.c.l.b16 %v214
    %v247 = vunpack.c.l.b16 %v215
    %v248 = vunpack.c.l.b16 %v216
    %v249 = vunpack.c.l.b16 %v217
    %v250 = vunpack.c.l.b16 %v218
    %v251 = vunpack.c.l.b16 %v219
    %v252 = vunpack.c.l.b16 %v220
    %v253 = vunpack.c.l.b16 %v221
    %v254 = vunpack.c.l.b16 %v222
    %v255 = vunpack.c.l.b16 %v223
    %v256 = vunpack.c.l.b16 %v224
    %v257 = vpack.c.b16 %v242, %v241
    %v258 = vpack.c.b16 %v244, %v243
    %v259 = vpack.c.b16 %v246, %v245
    %v260 = vpack.c.b16 %v248, %v247
    %v261 = vpack.c.b16 %v250, %v249
    %v262 = vpack.c.b16 %v252, %v251
    %v263 = vpack.c.b16 %v254, %v253
    %v264 = vpack.c.b16 %v256, %v255
    %273 = vmatpush.bf16.msra.mxu0 %v264
    %274 = vmatpush.bf16.msra.mxu0 %v263
    %275 = vmatpush.bf16.msra.mxu0 %v262
    %276 = vmatpush.bf16.msra.mxu0 %v261
    %277 = vmatpush.bf16.msra.mxu0 %v260
    %278 = vmatpush.bf16.msra.mxu0 %v259
    %279 = vmatpush.bf16.msra.mxu0 %v258
    %280 = vmatpush.bf16.msra.mxu0 %v257
    %281 = vmatmul.bf16.gmra.mxu0 0
    %v282 = vpop.f32.mrf.mxu0
    %v283 = vadd.f32 0.0, %v282
    %v284 = vpop.f32.mrf.mxu0
    %285 = vdwg.mxu0
    %v286 = vadd.f32 %v190, %v283
    %v287 = vpack.c.bf16 %v286, %v286
    %v288 = vunpack.c.l.bf16 %v287
    %v289 = vtanh.pop %v288
    %v290 = vpack.c.bf16 %v289, %v289
    %v291 = vunpack.c.l.bf16 %v290
    %v292 = vadd.f32 %v291, 0.0
    %293 = vmatpush.bf16.msra.mxu0 %v264
    %294 = vmatpush.bf16.msra.mxu0 %v263
    %295 = vmatpush.bf16.msra.mxu0 %v262
    %296 = vmatpush.bf16.msra.mxu0 %v261
    %297 = vmatpush.bf16.msra.mxu0 %v260
    %298 = vmatpush.bf16.msra.mxu0 %v259
    %299 = vmatpush.bf16.msra.mxu0 %v258
    %300 = vmatpush.bf16.msra.mxu0 %v257
    %301 = vmatmul.bf16.gmra.mxu0 %v290
    %v302 = vpop.f32.mrf.mxu0
    %v303 = vadd.f32 0.0, %v302
    %v304 = vpop.f32.mrf.mxu0
    %305 = vdwg.mxu0
    %v306 = vadd.f32 %v192, %v303
    %v307 = vpack.c.bf16 %v306, %v306
    %v308 = vunpack.c.l.bf16 %v307
    %v309 = vtanh.pop %v308
    %v310 = vpack.c.bf16 %v309, %v309
    %v311 = vunpack.c.l.bf16 %v310
    %v312 = vadd.f32 %v292, %v311
    %313 = vmatpush.bf16.msra.mxu0 %v264
    %314 = vmatpush.bf16.msra.mxu0 %v263
    %315 = vmatpush.bf16.msra.mxu0 %v262
    %316 = vmatpush.bf16.msra.mxu0 %v261
    %317 = vmatpush.bf16.msra.mxu0 %v260
    %318 = vmatpush.bf16.msra.mxu0 %v259
    %319 = vmatpush.bf16.msra.mxu0 %v258
    %320 = vmatpush.bf16.msra.mxu0 %v257
    %321 = vmatmul.bf16.gmra.mxu0 %v310
    %v322 = vpop.f32.mrf.mxu0
    %v323 = vadd.f32 0.0, %v322
    %v324 = vpop.f32.mrf.mxu0
    %325 = vdwg.mxu0
    %v326 = vadd.f32 %v195, %v323
    %v327 = vpack.c.bf16 %v326, %v326
    %v328 = vunpack.c.l.bf16 %v327
    %v329 = vtanh.pop %v328
    %v330 = vpack.c.bf16 %v329, %v329
    %v331 = vunpack.c.l.bf16 %v330
    %v332 = vadd.f32 %v312, %v331
    %333 = vmatpush.bf16.msra.mxu0 %v264
    %334 = vmatpush.bf16.msra.mxu0 %v263
    %335 = vmatpush.bf16.msra.mxu0 %v262
    %336 = vmatpush.bf16.msra.mxu0 %v261
    %337 = vmatpush.bf16.msra.mxu0 %v260
    %338 = vmatpush.bf16.msra.mxu0 %v259
    %339 = vmatpush.bf16.msra.mxu0 %v258
    %340 = vmatpush.bf16.msra.mxu0 %v257
    %341 = vmatmul.bf16.gmra.mxu0 %v330
    %v342 = vpop.f32.mrf.mxu0
    %v343 = vadd.f32 0.0, %v342
    %v344 = vpop.f32.mrf.mxu0
    %345 = vdwg.mxu0
    %v346 = vadd.f32 %v197, %v343
    %v347 = vpack.c.bf16 %v346, %v346
    %v348 = vunpack.c.l.bf16 %v347
    %v349 = vtanh.pop %v348
    %v350 = vpack.c.bf16 %v349, %v349
    %v351 = vunpack.c.l.bf16 %v350
    %v352 = vadd.f32 %v332, %v351
    %353 = vmatpush.bf16.msra.mxu0 %v264
    %354 = vmatpush.bf16.msra.mxu0 %v263
    %355 = vmatpush.bf16.msra.mxu0 %v262
    %356 = vmatpush.bf16.msra.mxu0 %v261
    %357 = vmatpush.bf16.msra.mxu0 %v260
    %358 = vmatpush.bf16.msra.mxu0 %v259
    %359 = vmatpush.bf16.msra.mxu0 %v258
    %360 = vmatpush.bf16.msra.mxu0 %v257
    %361 = vmatmul.bf16.gmra.mxu0 %v350
    %v362 = vpop.f32.mrf.mxu0
    %v363 = vadd.f32 0.0, %v362
    %v364 = vpop.f32.mrf.mxu0
    %365 = vdwg.mxu0
    %v366 = vadd.f32 %v200, %v363
    %v367 = vpack.c.bf16 %v366, %v366
    %v368 = vunpack.c.l.bf16 %v367
    %v369 = vtanh.pop %v368
    %v370 = vpack.c.bf16 %v369, %v369
    %v371 = vunpack.c.l.bf16 %v370
    %v372 = vadd.f32 %v352, %v371
    %373 = vmatpush.bf16.msra.mxu0 %v264
    %374 = vmatpush.bf16.msra.mxu0 %v263
    %375 = vmatpush.bf16.msra.mxu0 %v262
    %376 = vmatpush.bf16.msra.mxu0 %v261
    %377 = vmatpush.bf16.msra.mxu0 %v260
    %378 = vmatpush.bf16.msra.mxu0 %v259
    %379 = vmatpush.bf16.msra.mxu0 %v258
    %380 = vmatpush.bf16.msra.mxu0 %v257
    %381 = vmatmul.bf16.gmra.mxu0 %v370
    %v382 = vpop.f32.mrf.mxu0
    %v383 = vadd.f32 0.0, %v382
    %v384 = vpop.f32.mrf.mxu0
    %385 = vdwg.mxu0
    %v386 = vadd.f32 %v202, %v383
    %v387 = vpack.c.bf16 %v386, %v386
    %v388 = vunpack.c.l.bf16 %v387
    %v389 = vtanh.pop %v388
    %v390 = vpack.c.bf16 %v389, %v389
    %v391 = vunpack.c.l.bf16 %v390
    %v392 = vadd.f32 %v372, %v391
    %393 = vmatpush.bf16.msra.mxu0 %v264
    %394 = vmatpush.bf16.msra.mxu0 %v263
    %395 = vmatpush.bf16.msra.mxu0 %v262
    %396 = vmatpush.bf16.msra.mxu0 %v261
    %397 = vmatpush.bf16.msra.mxu0 %v260
    %398 = vmatpush.bf16.msra.mxu0 %v259
    %399 = vmatpush.bf16.msra.mxu0 %v258
    %400 = vmatpush.bf16.msra.mxu0 %v257
    %401 = vmatmul.bf16.gmra.mxu0 %v390
    %v402 = vpop.f32.mrf.mxu0
    %v403 = vadd.f32 0.0, %v402
    %v404 = vpop.f32.mrf.mxu0
    %405 = vdwg.mxu0
    %v406 = vadd.f32 %v205, %v403
    %v407 = vpack.c.bf16 %v406, %v406
    %v408 = vunpack.c.l.bf16 %v407
    %v409 = vtanh.pop %v408
    %v410 = vpack.c.bf16 %v409, %v409
    %v411 = vunpack.c.l.bf16 %v410
    %v412 = vadd.f32 %v392, %v411
    %413 = vmatpush.bf16.msra.mxu0 %v264
    %414 = vmatpush.bf16.msra.mxu0 %v263
    %415 = vmatpush.bf16.msra.mxu0 %v262
    %416 = vmatpush.bf16.msra.mxu0 %v261
    %417 = vmatpush.bf16.msra.mxu0 %v260
    %418 = vmatpush.bf16.msra.mxu0 %v259
    %419 = vmatpush.bf16.msra.mxu0 %v258
    %420 = vmatpush.bf16.msra.mxu0 %v257
    %421 = vmatmul.bf16.gmra.mxu0 %v410
    %v422 = vpop.f32.mrf.mxu0
    %v423 = vadd.f32 0.0, %v422
    %v424 = vpop.f32.mrf.mxu0
    %425 = vdwg.mxu0
    %v426 = vadd.f32 %v207, %v423
    %v427 = vpack.c.bf16 %v426, %v426
    %v428 = vunpack.c.l.bf16 %v427
    %v429 = vtanh.pop %v428
    %v430 = vpack.c.bf16 %v429, %v429
    %v431 = vunpack.c.l.bf16 %v430
    %v432 = vadd.f32 %v412, %v431
    %v433 = vpack.c.bf16 %v432, %v432
    %v434 = vld [vmem:[#allocation5] sm:$0xf]
    %v435 = vld [vmem:[#allocation5 + $0x4] sm:$0xf]
    %v436 = vld [vmem:[#allocation5 + $0x8] sm:$0xf]
    %v437 = vld [vmem:[#allocation5 + $0xc] sm:$0xf]
    %v438 = vld [vmem:[#allocation5 + $0x10] sm:$0xf]
    %v439 = vld [vmem:[#allocation5 + $0x14] sm:$0xf]
    %v440 = vld [vmem:[#allocation5 + $0x18] sm:$0xf]
    %v441 = vld [vmem:[#allocation5 + $0x1c] sm:$0xf]
    %v442 = vld [vmem:[#allocation5 + $0x20] sm:$0xf]
    %v443 = vld [vmem:[#allocation5 + $0x24] sm:$0xf]
    %v444 = vld [vmem:[#allocation5 + $0x28] sm:$0xf]
    %v445 = vld [vmem:[#allocation5 + $0x2c] sm:$0xf]
    %v446 = vld [vmem:[#allocation5 + $0x30] sm:$0xf]
    %v447 = vld [vmem:[#allocation5 + $0x34] sm:$0xf]
    %v448 = vld [vmem:[#allocation5 + $0x38] sm:$0xf]
    %v449 = vld [vmem:[#allocation5 + $0x3c] sm:$0xf]
    %v450 = vld [vmem:[%s4] sm:$0x1]
    %v452 = vperm.slane %v450, 0
    %v470 = vunpack.c.l.b16 %v434
    %v471 = vunpack.c.l.b16 %v435
    %v472 = vunpack.c.l.b16 %v436
    %v473 = vunpack.c.l.b16 %v437
    %v474 = vunpack.c.l.b16 %v438
    %v475 = vunpack.c.l.b16 %v439
    %v476 = vunpack.c.l.b16 %v440
    %v477 = vunpack.c.l.b16 %v441
    %v478 = vunpack.c.l.b16 %v442
    %v479 = vunpack.c.l.b16 %v443
    %v480 = vunpack.c.l.b16 %v444
    %v481 = vunpack.c.l.b16 %v445
    %v482 = vunpack.c.l.b16 %v446
    %v483 = vunpack.c.l.b16 %v447
    %v484 = vunpack.c.l.b16 %v448
    %v485 = vunpack.c.l.b16 %v449
    %v486 = vpack.c.b16 %v471, %v470
    %v487 = vpack.c.b16 %v473, %v472
    %v488 = vpack.c.b16 %v475, %v474
    %v489 = vpack.c.b16 %v477, %v476
    %v490 = vpack.c.b16 %v479, %v478
    %v491 = vpack.c.b16 %v481, %v480
    %v492 = vpack.c.b16 %v483, %v482
    %v493 = vpack.c.b16 %v485, %v484
    %502 = vmatpush.bf16.msra.mxu0 %v493
    %503 = vmatpush.bf16.msra.mxu0 %v492
    %504 = vmatpush.bf16.msra.mxu0 %v491
    %505 = vmatpush.bf16.msra.mxu0 %v490
    %506 = vmatpush.bf16.msra.mxu0 %v489
    %507 = vmatpush.bf16.msra.mxu0 %v488
    %508 = vmatpush.bf16.msra.mxu0 %v487
    %509 = vmatpush.bf16.msra.mxu0 %v486
    %510 = vmatmul.bf16.gmra.mxu0 %v433
    %v511 = vpop.f32.mrf.mxu0
    %v512 = vadd.f32 %v452, %v511
    %v513 = vpop.f32.mrf.mxu0
    %514 = vdwg.mxu0
    %515 = vst [vmem:[#allocation7] sm:$0xff] %v512
    // Predicated region
    $region30: #{tpu_custom_call.1} parent=1 // pred_check
      _
    $region31: #{tpu_custom_call.1} parent=1 // pred_check_branch
      %517 = sbr.rel (0) target = $region33
    $region32: #{tpu_custom_call.1} parent=1 // pred_region
      %519 = vsyncadd [#allocation4], 0
      %s521 = sshll.u32 [#allocation7], 4
      %s522 = int_to_ptr.vmem [resolvable:$true] %s521
      %s523 = sshll.u32 %s5, 4
      %s524 = int_to_ptr.hbm [resolvable:$true] %s523
      %526 = dma.vmem_to_hbm [thread:$0]  %s522, 128, %s524, [#allocation4]
    $region33: #{tpu_custom_call.1} parent=1 // pred_fallthru
      _
    // Predicated region
    $region34: #{tpu_custom_call.1} parent=1 // pred_check
      _
    $region35: #{tpu_custom_call.1} parent=1 // pred_check_branch
      %528 = sbr.rel (0) target = $region37
    $region36: #{tpu_custom_call.1} parent=1 // pred_region
      %530 = dma.done [#allocation4], 128
    $region37: #{tpu_custom_call.1} parent=1 // pred_fallthru
      _
    %531 = vsyncpa [#allocation3], 1
    %532 = vsyncpa [#allocation6], 1
    %533 = vsyncpa [#allocation4], 1

</llo_original>
